<compile_context>
chip_gen: v7x
topology: tpu7x:2x2x1
jax: 0.10.0
libtpu: 0.0.40
codegen_flags: <defaults>
</compile_context>

<pallas_src>
import functools
from math import gcd

import numpy as np
import jax
import jax.numpy as jnp
from jax.experimental import pallas as pl
from jax.experimental.pallas import tpu as pltpu


def _round_up(x, m):
    return ((x + m - 1) // m) * m


def _sinpos_kernel(idx_ref, const_ref, out_ref, *, fold):
    """One row-tile of folded sinusoidal embeddings.

    idx_ref:   (tile_r, fold) f32 -- `fold` original positions per kernel row.
    const_ref: (3, C) f32         -- row 0: div term per wide column,
                                     row 1: phase (0 or pi/2 -> sin vs cos column),
                                     row 2: fold-group id per wide column.
    out_ref:   (tile_r, C) f32, C = fold * d_model (lane dense when folded).
    """
    div = const_ref[0:1, :]        # (1, C)
    phase = const_ref[1:2, :]      # (1, C)
    idx = idx_ref[...]             # (tile_r, fold)

    # Broadcast position j of each kernel row across its d_model-wide column group.
    # Pure VPU compare/select work; the EUP sin below is the binding unit.
    idx_wide = idx[:, 0:1]
    if fold > 1:
        grp = const_ref[2:3, :]    # (1, C)
        for j in range(1, fold):
            idx_wide = jnp.where(grp == jnp.float32(j), idx[:, j:j + 1], idx_wide)

    # Single transcendental per output element: cos(x) == sin(x + pi/2).
    out_ref[...] = jnp.sin(idx_wide * div + phase)


def sinusoidal_positional_embedding(emb_indices, d_model, *, tile_rows=512, max_fold=16):
    """JAX/Pallas equivalent of SinusoidalPositionalEmbedding.forward.

    Args:
        emb_indices: array of any shape (*), any real dtype.
        d_model: even embedding dimension.
        tile_rows: kernel rows per grid step (tuned parameter; clamped to VMEM budget).
        max_fold: cap on the row-folding factor for unusual d_model values.

    Returns:
        float32 array of shape (*, d_model), last dim interleaved [sin, cos] pairs.
    """
    if d_model % 2 != 0:
        raise ValueError(f"Sinusoidal positional encoding with odd d_model: {d_model}")

    input_shape = emb_indices.shape
    idx_flat = jnp.reshape(emb_indices.astype(jnp.float32), (-1,))
    n = idx_flat.shape[0]

    # Fold factor so the kernel output's last dim (C) is a multiple of 128 (lane dense).
    fold = 128 // gcd(d_model, 128)
    if fold > max_fold:
        fold = 1                      # fall back to unfolded layout for odd-ball d_model
    c = fold * d_model

    # Row tiling: large tiles amortize the ~0.35us per-grid-step overhead, clamped so the
    # double-buffered output block stays under ~8 MiB (headroom on v7x's 64 MiB VMEM).
    r = pl.cdiv(n, fold)
    max_tile_r = max(8, ((8 * 1024 * 1024) // (2 * c * 4)) // 8 * 8)
    tile_r = max(8, min(_round_up(tile_rows, 8), _round_up(r, 8), max_tile_r))
    r_pad = _round_up(r, tile_r)

    # Pad only the (small) flattened index vector, then fold rows into lane groups.
    idx_fold = jnp.pad(idx_flat, (0, r_pad * fold - n)).reshape(r_pad, fold)

    # Constants (computed once; same jnp.exp as the reference so div matches exactly).
    half = jnp.arange(0, d_model, 2, dtype=jnp.float32)
    div_term = jnp.exp(half * (-np.log(10000.0) / d_model))                 # (d_model//2,)
    div_wide = jnp.tile(jnp.repeat(div_term, 2), (fold,))                   # (C,)
    phase_wide = jnp.tile(jnp.array([0.0, np.pi / 2.0], jnp.float32), (c // 2,))
    grp_wide = jnp.repeat(jnp.arange(fold, dtype=jnp.float32), d_model)     # (C,)
    consts = jnp.stack([div_wide, phase_wide, grp_wide], axis=0)            # (3, C)

    grid = (r_pad // tile_r,)
    kernel = functools.partial(_sinpos_kernel, fold=fold)

    out = pl.pallas_call(
        kernel,
        out_shape=jax.ShapeDtypeStruct((r_pad, c), jnp.float32),
        grid_spec=pltpu.PrefetchScalarGridSpec(
            num_scalar_prefetch=0,
            grid=grid,
            in_specs=[
                pl.BlockSpec((tile_r, fold), lambda i: (i, 0)),   # folded indices
                pl.BlockSpec((3, c), lambda i: (0, 0)),           # constants (not re-DMA'd)
            ],
            out_specs=pl.BlockSpec((tile_r, c), lambda i: (i, 0)),
        ),
        compiler_params=pltpu.CompilerParams(
            dimension_semantics=("parallel",),        # lets v7x split row tiles across its 2 TCs
            vmem_limit_bytes=32 * 1024 * 1024,
        ),
    )(idx_fold, consts)

    # Unfold back to (N, d_model); slice is a no-op when N is already tile-aligned.
    out = out.reshape(r_pad * fold, d_model)
    if r_pad * fold != n:
        out = out[:n]
    return out.reshape(*input_shape, d_model)


def _reference(emb_indices, d_model):
    """Pure-JAX reference mirroring the PyTorch forward exactly."""
    input_shape = emb_indices.shape
    div_indices = jnp.arange(0, d_model, 2, dtype=jnp.float32)
    div_term = jnp.exp(div_indices * (-np.log(10000.0) / d_model))
    omegas = emb_indices.astype(jnp.float32).reshape(-1, 1, 1) * div_term.reshape(1, -1, 1)
    sin_e = jnp.sin(omegas)
    cos_e = jnp.cos(omegas)
    emb = jnp.concatenate([sin_e, cos_e], axis=2)
    return emb.reshape(*input_shape, d_model)


if __name__ == "__main__":
    key = jax.random.PRNGKey(0)

    # Tolerance note: cos is computed as sin(x + pi/2); the f32 phase-add rounding at
    # |x| ~ 100 contributes <= ~4e-6, comfortably inside 2e-5.
    def _check(shape, d_model):
        k = jax.random.fold_in(key, d_model + sum(shape))
        emb_indices = jax.random.uniform(k, shape, dtype=jnp.float32) * 100.0
        out = jax.block_until_ready(sinusoidal_positional_embedding(emb_indices, d_model))
        ref = _reference(emb_indices, d_model)
        assert out.shape == (*shape, d_model)
        err = float(jnp.max(jnp.abs(out - ref)))
        assert jnp.allclose(out, ref, atol=2e-5, rtol=2e-5), err

    _check((2, 8), 32)     # small d_model -> folded (fold=4) lane-dense path
    _check((5,), 32)       # ragged N (not a multiple of fold/tile) -> padding + slice path
    _check((3, 5), 128)    # d_model multiple of 128 -> fold=1 path

    print("KERNEL_OK")
</pallas_src>

<mosaic_0001>
module attributes {stable_mosaic.version = 11 : i64} {
  func.func @_sinpos_kernel(%arg0: i32, %arg1: memref<8x4xf32, #tpu.memory_space<vmem>>, %arg2: memref<3x128xf32, #tpu.memory_space<vmem>>, %arg3: memref<8x128xf32, #tpu.memory_space<vmem>>) attributes {dimension_semantics = [#tpu.dimension_semantics<parallel>], iteration_bounds = array<i64: 1>, scalar_prefetch = 0 : i64, scratch_operands = 0 : i64, tpu.core_type = #tpu.core_type<tc>, window_params = [{transform_indices = @transform_0, window_bounds = array<i64: 8, 4>}, {pipeline_mode = #tpu.pipeline_mode<synchronous>, transform_indices = @transform_1, window_bounds = array<i64: 3, 128>}, {transform_indices = @transform_2, window_bounds = array<i64: 8, 128>}]} {
    %c0 = arith.constant 0 : index
    %c0_0 = arith.constant 0 : index
    %0 = vector.load %arg2[%c0, %c0_0] : memref<3x128xf32, #tpu.memory_space<vmem>>, vector<1x128xf32>
    %c1 = arith.constant 1 : index
    %c0_1 = arith.constant 0 : index
    %1 = vector.load %arg2[%c1, %c0_1] : memref<3x128xf32, #tpu.memory_space<vmem>>, vector<1x128xf32>
    %c0_2 = arith.constant 0 : index
    %c0_3 = arith.constant 0 : index
    %2 = vector.load %arg1[%c0_2, %c0_3] : memref<8x4xf32, #tpu.memory_space<vmem>>, vector<8x4xf32>
    %3 = vector.extract_strided_slice %2 {offsets = [0, 0], sizes = [8, 1], strides = [1, 1]} : vector<8x4xf32> to vector<8x1xf32>
    %c2 = arith.constant 2 : index
    %c0_4 = arith.constant 0 : index
    %4 = vector.load %arg2[%c2, %c0_4] : memref<3x128xf32, #tpu.memory_space<vmem>>, vector<1x128xf32>
    %cst = arith.constant 1.000000e+00 : f32
    %5 = vector.broadcast %cst : f32 to vector<1x128xf32>
    %6 = arith.cmpf oeq, %4, %5 : vector<1x128xf32>
    %7 = vector.extract_strided_slice %2 {offsets = [0, 1], sizes = [8, 1], strides = [1, 1]} : vector<8x4xf32> to vector<8x1xf32>
    %8 = vector.shape_cast %6 : vector<1x128xi1> to vector<1x128xi1>
    %9 = vector.broadcast %8 : vector<1x128xi1> to vector<8x128xi1>
    %10 = vector.shape_cast %7 : vector<8x1xf32> to vector<8x1xf32>
    %11 = vector.broadcast %10 : vector<8x1xf32> to vector<8x128xf32>
    %12 = vector.shape_cast %3 : vector<8x1xf32> to vector<8x1xf32>
    %13 = vector.broadcast %12 : vector<8x1xf32> to vector<8x128xf32>
    %14 = arith.select %9, %11, %13 : vector<8x128xi1>, vector<8x128xf32>
    %cst_5 = arith.constant 2.000000e+00 : f32
    %15 = vector.broadcast %cst_5 : f32 to vector<1x128xf32>
    %16 = arith.cmpf oeq, %4, %15 : vector<1x128xf32>
    %17 = vector.extract_strided_slice %2 {offsets = [0, 2], sizes = [8, 1], strides = [1, 1]} : vector<8x4xf32> to vector<8x1xf32>
    %18 = vector.shape_cast %16 : vector<1x128xi1> to vector<1x128xi1>
    %19 = vector.broadcast %18 : vector<1x128xi1> to vector<8x128xi1>
    %20 = vector.shape_cast %17 : vector<8x1xf32> to vector<8x1xf32>
    %21 = vector.broadcast %20 : vector<8x1xf32> to vector<8x128xf32>
    %22 = arith.select %19, %21, %14 : vector<8x128xi1>, vector<8x128xf32>
    %cst_6 = arith.constant 3.000000e+00 : f32
    %23 = vector.broadcast %cst_6 : f32 to vector<1x128xf32>
    %24 = arith.cmpf oeq, %4, %23 : vector<1x128xf32>
    %25 = vector.extract_strided_slice %2 {offsets = [0, 3], sizes = [8, 1], strides = [1, 1]} : vector<8x4xf32> to vector<8x1xf32>
    %26 = vector.shape_cast %24 : vector<1x128xi1> to vector<1x128xi1>
    %27 = vector.broadcast %26 : vector<1x128xi1> to vector<8x128xi1>
    %28 = vector.shape_cast %25 : vector<8x1xf32> to vector<8x1xf32>
    %29 = vector.broadcast %28 : vector<8x1xf32> to vector<8x128xf32>
    %30 = arith.select %27, %29, %22 : vector<8x128xi1>, vector<8x128xf32>
    %31 = vector.broadcast %0 : vector<1x128xf32> to vector<8x128xf32>
    %32 = arith.mulf %30, %31 : vector<8x128xf32>
    %33 = vector.broadcast %1 : vector<1x128xf32> to vector<8x128xf32>
    %34 = arith.addf %32, %33 : vector<8x128xf32>
    %35 = math.sin %34 : vector<8x128xf32>
    %c0_7 = arith.constant 0 : index
    %c0_8 = arith.constant 0 : index
    %36 = vector.load %arg3[%c0_7, %c0_8] : memref<8x128xf32, #tpu.memory_space<vmem>>, vector<8x128xf32>
    tpu.vector_store %arg3[%c0_7, %c0_8], %35 {strides = array<i32>} : memref<8x128xf32, #tpu.memory_space<vmem>>, vector<8x128xf32>,
    return
  }
  func.func @transform_0(%arg0: i32) -> (i32, i32) {
    %c0_i32 = arith.constant 0 : i32
    %c0_i32_0 = arith.constant 0 : i32
    return %arg0, %c0_i32 : i32, i32
  }
  func.func @transform_1(%arg0: i32) -> (i32, i32) {
    %c0_i32 = arith.constant 0 : i32
    %c0_i32_0 = arith.constant 0 : i32
    %c0_i32_1 = arith.constant 0 : i32
    return %c0_i32, %c0_i32_0 : i32, i32
  }
  func.func @transform_2(%arg0: i32) -> (i32, i32) {
    %c0_i32 = arith.constant 0 : i32
    %c0_i32_0 = arith.constant 0 : i32
    return %arg0, %c0_i32 : i32, i32
  }
}

</mosaic_0001>

<llo_original>
// kernel: tpu_custom_call.1
$region0: #{tpu_custom_call.1}
  #allocation0 [shape = 'u32[]', space=smem, size = 0x4, offset = 0x4, fixed_abs, tag = 'smem constant byte address 0x4 - core index']
  #allocation1 [shape = 'u32[144,128]{1,0:T(1,128)}', space=vmem, size = 0x12000, scoped, tag = 'internal scratch']
  %s0 = inlined_call_operand.vmem [shape: f32[8,4], index: 0, kind: input, shape index: {}]
  %s1 = inlined_call_operand.vmem [shape: f32[3,128], index: 1, kind: input, shape index: {}]
  %s2 = inlined_call_operand.hbm [shape: f32[8,128], index: 2, kind: output, shape index: {}]
  %s3 = sld [smem:[#allocation0]]
  $region18: #{tpu_custom_call.1} parent=0
    _
  %s5 = ssub.s32 1, %s3
  %s6 = scalar_select 0, %s5, %s3
  $region1: #{tpu_custom_call.1} parent=0
    #allocation2 [shape = 'u8[4096]{0}', space=vmem, size = 0x1000, scoped, tag = 'output window, operand 0, single buffered']
    #allocation3 [shape = 's32[1]{0}', space=sflag, size = 0x4, scoped, tag = 'scoped memory for tpu_custom_call.1']
    %7 = vsyncpa [#allocation3], 0
    // Predicated region
    $region2: #{tpu_custom_call.1} parent=1 // pred_check
      _
    $region3: #{tpu_custom_call.1} parent=1 // pred_check_branch
      %9 = sbr.rel (0) target = $region5
    $region4: #{tpu_custom_call.1} parent=1 // pred_region
      _
    $region5: #{tpu_custom_call.1} parent=1 // pred_fallthru
      _
    // Predicated region
    $region6: #{tpu_custom_call.1} parent=1 // pred_check
      _
    $region7: #{tpu_custom_call.1} parent=1 // pred_check_branch
      %11 = sbr.rel (0) target = $region9
    $region8: #{tpu_custom_call.1} parent=1 // pred_region
      _
    $region9: #{tpu_custom_call.1} parent=1 // pred_fallthru
      _
    %v12 = vld [vmem:[%s1] sm:$0x1]
    %v13 = vld [vmem:[%s1 + $0x1] sm:$0x1]
    %v14 = vld [vmem:[%s0] sm:$0xff]
    %v15 = vld [vmem:[%s1 + $0x2] sm:$0x1]
    %vm16 = vcmp.eq.f32.partialorder %v15, 1.0
    %v17 = vsel %vm16, 1, 0
    %v18 = vlaneseq
    %v19 = vshrl.u32 %v18, 7
    %v20 = vsub.s32 0, %v19
    %v21 = vrot.slane %v17, %v20
    %vm22 = vcmp.eq.s32.totalorder %v21, 1
    %24 = vset.pattern.permute.xlu0 1
    %25 = vperm.xlu0 %24, %v14
    %v26 = vpop.permute.xlu0 %25
    %28 = vset.pattern.permute.xlu0 0
    %29 = vperm.xlu0 %28, %v14
    %v30 = vpop.permute.xlu0 %29
    %v32 = vsel %vm22, %v26, %v30
    %vm33 = vcmp.eq.f32.partialorder %v15, 2.0
    %v34 = vsel %vm33, 1, 0
    %v35 = vlaneseq
    %v36 = vshrl.u32 %v35, 7
    %v37 = vsub.s32 0, %v36
    %v38 = vrot.slane %v34, %v37
    %vm39 = vcmp.eq.s32.totalorder %v38, 1
    %40 = vset.pattern.permute.xlu0 2
    %41 = vperm.xlu0 %40, %v14
    %v42 = vpop.permute.xlu0 %41
    %v44 = vsel %vm39, %v42, %v32
    %vm45 = vcmp.eq.f32.partialorder %v15, 3.0
    %v46 = vsel %vm45, 1, 0
    %v47 = vlaneseq
    %v48 = vshrl.u32 %v47, 7
    %v49 = vsub.s32 0, %v48
    %v50 = vrot.slane %v46, %v49
    %vm51 = vcmp.eq.s32.totalorder %v50, 1
    %52 = vset.pattern.permute.xlu0 3
    %53 = vperm.xlu0 %52, %v14
    %v54 = vpop.permute.xlu0 %53
    %v56 = vsel %vm51, %v54, %v44
    %v57 = vlaneseq
    %v58 = vshrl.u32 %v57, 7
    %v59 = vsub.s32 0, %v58
    %v60 = vrot.slane %v12, %v59
    %v61 = vmul.f32 %v56, %v60
    %v62 = vlaneseq
    %v63 = vshrl.u32 %v62, 7
    %v64 = vsub.s32 0, %v63
    %v65 = vrot.slane %v13, %v64
    %v66 = vadd.f32 %v61, %v65
    %v67 = vand.u32 2147483647, %v66
    %vm68 = vcmp.le.f32.partialorder %v67, 0.7853982
    %vm69 = vcmp.lt.s32.totalorder %v66, 0
    %v70 = vand.u32 %v66, 2139095040
    %v71 = vshrl.u32 %v70, 23
    %v72 = vsub.s32 %v71, 127
    %v73 = vand.u32 2147483647, %v66
    %v74 = vand.u32 %v73, 8388607
    %v75 = vor.u32 %v74, 8388608
    %v76 = vsub.s32 0, %v75
    %v77 = vadd.s32 %v72, 1
    %vm78 = vcmp.gt.s32.totalorder %v77, 0
    %v79 = vsel %vm78, %v77, 0
    %v80 = vshrl.u32 %v79, 5
    %v81 = vand.u32 %v79, 31
    %v82 = vsub.s32 32, %v81
    %v83 = vshrl.u32 683565275, %v82
    %v84 = vshll.u32 683565275, %v81
    %v85 = vshrl.u32 2475754826, %v82
    %v86 = vor.u32 %v84, %v85
    %v87 = vshll.u32 2475754826, %v81
    %v88 = vshrl.u32 2131351028, %v82
    %v89 = vor.u32 %v87, %v88
    %v90 = vshll.u32 2131351028, %v81
    %v91 = vshrl.u32 2102212464, %v82
    %v92 = vor.u32 %v90, %v91
    %v93 = vshll.u32 2102212464, %v81
    %v94 = vshrl.u32 920167782, %v82
    %v95 = vor.u32 %v93, %v94
    %v96 = vshll.u32 920167782, %v81
    %v97 = vshrl.u32 1326507024, %v82
    %v98 = vor.u32 %v96, %v97
    %vm99 = vcmp.lt.s32.totalorder %v80, 1
    %vm100 = vcmp.lt.s32.totalorder %v80, 2
    %vm101 = vcmp.lt.s32.totalorder %v80, 3
    %vm102 = vcmp.lt.s32.totalorder %v80, 4
    %v103 = vsel %vm99, %v83, %v86
    %v104 = vsel %vm102, %v92, 2102212464
    %v105 = vsel %vm101, %v89, %v104
    %v106 = vsel %vm100, %v103, %v105
    %v107 = vsel %vm99, %v86, %v89
    %v108 = vsel %vm102, %v95, 920167782
    %v109 = vsel %vm101, %v92, %v108
    %v110 = vsel %vm100, %v107, %v109
    %v111 = vsel %vm99, %v89, %v92
    %v112 = vsel %vm102, %v98, 1326507024
    %v113 = vsel %vm101, %v95, %v112
    %v114 = vsel %vm100, %v111, %v113
    %v115 = vshll.u32 %v75, 8
    %v116 = vmul.u32.u64.compose %v115, %v114
    %v117 = vextract.low.u32 %v116
    %v118 = vextract.high.u32 %v116
    %v119 = vmul.u32.u64.compose %v115, %v110
    %v120 = vextract.low.u32 %v119
    %v121 = vextract.high.u32 %v119
    %v122 = vmul.u32 %v115, %v106
    %v123 = vadd.s32 %v118, %v120
    %vm124 = vc.u32 %v118, %v120
    %v125 = vadd.s32 %v121, 1
    %v126 = vsel %vm124, %v125, %v121
    %v127 = vadd.s32 %v122, %v126
    %v128 = vadd.s32 %v127, 536870912
    %v129 = vshrl.u32 %v128, 30
    %v130 = vshll.u32 %v129, 30
    %v131 = vsub.s32 %v127, %v130
    %vm132 = vcmp.lt.s32.totalorder %v131, 0
    %v133 = vsub.s32 0, %v131
    %v134 = vsel %vm132, %v133, %v131
    %v135 = vclz %v134
    %v136 = vsub.s32 %v135, 2
    %vm137 = vcmp.gt.s32.totalorder 0, %v136
    %v138 = vsel %vm137, 0, %v136
    %v139 = vsub.s32 32, %v138
    %v140 = vshll.u32 %v131, %v138
    %v141 = vshrl.u32 %v123, %v139
    %v142 = vor.u32 %v140, %v141
    %v143 = vsub.s32 4294967266, %v138
    %v144 = vadd.s32 %v143, 127
    %v145 = vshll.u32 %v144, 23
    %v146 = vor.u32 4788187, %v145
    %v147 = vand.u32 2147483647, %v146
    %v149 = vcvt.s32.f32 %v142
    %v150 = vmul.f32 %v149, %v147
    %v151 = vxor.u32 %v150, 2147483648
    %v152 = vsel %vm69, %v151, %v150
    %v153 = vsub.s32 4, %v129
    %v154 = vsel %vm69, %v153, %v129
    %v155 = vsel %vm68, %v66, %v152
    %v156 = vsel %vm68, 0, %v154
    %v157 = vcosq.f32.pop %v155
    %v158 = vsinq.f32.pop %v155
    %vm159 = vweird.f32 %v66
    %v160 = vadd.s32 %v156, 3
    %v161 = vand.u32 %v160, 3
    %vm162 = vcmp.lt.s32.totalorder %v161, 2
    %vm163 = vcmp.eq.s32.totalorder %v161, 0
    %v164 = vxor.u32 %v158, 2147483648
    %v165 = vsel %vm163, %v157, %v164
    %vm166 = vcmp.eq.s32.totalorder %v161, 2
    %v167 = vxor.u32 %v157, 2147483648
    %v168 = vsel %vm166, %v167, %v158
    %v169 = vsel %vm162, %v165, %v168
    %v170 = vsel %vm159, nan, %v169
    %171 = vst [vmem:[#allocation2] sm:$0xff] %v170
    // Predicated region
    $region10: #{tpu_custom_call.1} parent=1 // pred_check
      _
    $region11: #{tpu_custom_call.1} parent=1 // pred_check_branch
      %173 = sbr.rel (0) target = $region13
    $region12: #{tpu_custom_call.1} parent=1 // pred_region
      %s175 = ssub.s32 128, 128
      %176 = vsyncadd [#allocation3], %s175
      %s178 = sshll.u32 [#allocation2], 4
      %s179 = int_to_ptr.vmem [resolvable:$true] %s178
      %181 = dma.vmem_to_hbm [thread:$0]  %s179, 128, %s2, [#allocation3]
    $region13: #{tpu_custom_call.1} parent=1 // pred_fallthru
      _
    // Predicated region
    $region14: #{tpu_custom_call.1} parent=1 // pred_check
      _
    $region15: #{tpu_custom_call.1} parent=1 // pred_check_branch
      %183 = sbr.rel (0) target = $region17
    $region16: #{tpu_custom_call.1} parent=1 // pred_region
      %184 = dma.done [#allocation3], 128
    $region17: #{tpu_custom_call.1} parent=1 // pred_fallthru
      _
    %185 = vsyncpa [#allocation3], 1

</llo_original>
